<compile_context>
chip_gen: v7x
topology: tpu7x:2x2x1
jax: 0.10.0
libtpu: 0.0.40
codegen_flags: <defaults>
</compile_context>

<pallas_src>
import functools

import jax
import jax.numpy as jnp
from jax import lax
from jax.experimental import pallas as pl
from jax.experimental.pallas import tpu as pltpu


def _make_reproj_kernel(H, W, tr, lanes, eps, normalized):
    """Builds the fused reprojection kernel for fixed static params."""
    w_f = float(W)
    inv_w = 1.0 / float(W)
    lanes_f = float(lanes)
    # (u / (W-1) - 0.5) * 2  ==  u * (2/(W-1)) - 1   (single FMA)
    u_scale = 2.0 / float(W - 1) if W > 1 else 2.0
    v_scale = 2.0 / float(H - 1) if H > 1 else 2.0

    def kernel(coef_ref, depth_ref, out_ref):
        n = pl.program_id(0)          # batch index
        r = pl.program_id(1)          # spatial row-tile index

        d = depth_ref[0]              # (tr, lanes) f32

        # ---- in-kernel pixel-coordinate generation (no HBM grid traffic) ----
        ri = lax.broadcasted_iota(jnp.int32, (tr, lanes), 0).astype(jnp.float32)
        ci = lax.broadcasted_iota(jnp.int32, (tr, lanes), 1).astype(jnp.float32)
        base = (r * (tr * lanes)).astype(jnp.float32)          # scalar
        p = base + ri * lanes_f + ci                           # flat pixel idx (<2^24: exact)

        # x = p mod W, y = p // W  via float multiply + floor + exact +/-1 fixup.
        y = jnp.floor((p + 0.5) * inv_w)
        x = p - y * w_f
        adj = (x >= w_f).astype(jnp.float32) - (x < 0.0).astype(jnp.float32)
        y = y + adj
        x = x - adj * w_f

        # ---- per-batch composed 3x4 projection, 12 scalars from SMEM ----
        b00 = coef_ref[n, 0]; b01 = coef_ref[n, 1]; b02 = coef_ref[n, 2]
        b10 = coef_ref[n, 3]; b11 = coef_ref[n, 4]; b12 = coef_ref[n, 5]
        b20 = coef_ref[n, 6]; b21 = coef_ref[n, 7]; b22 = coef_ref[n, 8]
        c0  = coef_ref[n, 9]; c1  = coef_ref[n, 10]; c2 = coef_ref[n, 11]

        # VPU broadcast-FMA (no MXU):  p2d_i = depth * (B[i,:] @ [x;y;1]) + c_i
        u = d * (b00 * x + b01 * y + b02) + c0
        v = d * (b10 * x + b11 * y + b12) + c1
        z = d * (b20 * x + b21 * y + b22) + c2

        inv_z = pl.reciprocal(z + eps, approx=False)   # exact divide (checked vs ref)
        u = u * inv_z
        v = v * inv_z
        if normalized:
            u = u * u_scale - 1.0
            v = v * v_scale - 1.0

        out_ref[0, 0] = u
        out_ref[0, 1] = v

    return kernel


def reprojection(depth, T, K, inv_K, *, normalized=True, eps=1e-7):
    """Fused Backprojection -> Transformation3D -> Projection.

    depth: [N,1,H,W]; T, K, inv_K: [N,4,4]  ->  xy: [N,H,W,2]
    (== Reprojection.forward of the PyTorch module)
    """
    N, one, H, W = depth.shape
    assert one == 1, "depth must be [N,1,H,W]"
    HW = H * W
    f32 = jnp.float32
    hp = lax.Precision.HIGHEST

    d_flat = depth.astype(f32).reshape(N, HW)
    T = T.astype(f32)
    K = K.astype(f32)
    inv_K = inv_K.astype(f32)

    # Compose all 4x4 matrices once per batch into 12 scalars (true f32 precision):
    #   p2d = depth * (B @ [x;y;1]) + c,
    #   B = (K[:, :3, :] @ T)[:, :, :3] @ inv_K[:, :3, :3],  c = (K[:, :3, :] @ T)[:, :, 3]
    P = jnp.einsum('nij,njk->nik', K[:, :3, :], T, precision=hp)                # [N,3,4]
    B = jnp.einsum('nij,njk->nik', P[:, :, :3], inv_K[:, :3, :3], precision=hp) # [N,3,3]
    c = P[:, :, 3]                                                              # [N,3]
    coef = jnp.concatenate([B.reshape(N, 9), c], axis=1)                        # [N,12] -> SMEM

    # Lane-dense spatial tiling: view flat HW as (rows, lanes), lanes % 128 == 0.
    lanes = min(1024, ((HW + 127) // 128) * 128)
    rows = -(-HW // lanes)
    tr = min(rows, 256)                     # 256*1024*4B = 1 MiB depth block per buffer
    rows_p = -(-rows // tr) * tr
    HWp = rows_p * lanes
    if HWp != HW:                           # pad instead of hard-asserting divisibility
        d_flat = jnp.pad(d_flat, ((0, 0), (0, HWp - HW)))
    d3 = d_flat.reshape(N, rows_p, lanes)

    grid = (N, rows_p // tr)
    kernel = _make_reproj_kernel(H, W, tr, lanes, float(eps), bool(normalized))

    out = pl.pallas_call(
        kernel,
        out_shape=jax.ShapeDtypeStruct((N, 2, rows_p, lanes), f32),
        grid_spec=pltpu.PrefetchScalarGridSpec(
            num_scalar_prefetch=1,          # coef -> SMEM, read as broadcast scalars
            grid=grid,
            in_specs=[
                pl.BlockSpec((1, tr, lanes), lambda n, r, c_ref: (n, r, 0)),    # depth
            ],
            out_specs=pl.BlockSpec((1, 2, tr, lanes), lambda n, r, c_ref: (n, 0, r, 0)),
        ),
        compiler_params=pltpu.CompilerParams(
            dimension_semantics=("parallel", "parallel"),
            vmem_limit_bytes=32 * 1024 * 1024,
        ),
    )(coef, d3)

    # Lane-dense kernel output -> module layout [N,H,W,2] (layout plumbing only).
    xy = out.reshape(N, 2, HWp)[:, :, :HW].reshape(N, 2, H, W)
    return jnp.transpose(xy, (0, 2, 3, 1))


@functools.partial(jax.jit, static_argnames=("normalized",))
def rigid_flow(depth, T, K, inv_K, normalized=True):
    """RigidFlow forward (minus PixToFlow, which is not defined in the spec)."""
    xy = reprojection(depth, T, K, inv_K, normalized=normalized)
    # TODO(synk): PixToFlow is not provided in the spec; returning the reprojected
    # pixel coordinates (Reprojection output) instead of subtracting a base grid.
    return xy


# ---------------------------- pure-JAX reference ------------------------------
def _reference_reprojection(depth, T, K, inv_K, normalized=True, eps=1e-7):
    """Mirrors the PyTorch Backprojection/Transformation3D/Projection exactly."""
    hp = lax.Precision.HIGHEST
    N, _, H, W = depth.shape
    xs, ys = jnp.meshgrid(jnp.arange(W, dtype=jnp.float32),
                          jnp.arange(H, dtype=jnp.float32), indexing='xy')
    grid = jnp.stack([xs.reshape(-1), ys.reshape(-1)], axis=0)             # [2,HW]
    grid = jnp.concatenate([grid, jnp.ones((1, H * W), jnp.float32)], 0)   # [3,HW]
    grid = jnp.broadcast_to(grid[None], (N, 3, H * W))
    pts = jnp.matmul(inv_K[:, :3, :3], grid, precision=hp)
    pts = depth.reshape(N, 1, -1) * pts
    pts = jnp.concatenate([pts, jnp.ones((N, 1, H * W), jnp.float32)], 1)  # [N,4,HW]
    pts = jnp.matmul(T, pts, precision=hp)
    p2d = jnp.matmul(K[:, :3, :], pts, precision=hp)
    uv = p2d[:, :2] / (p2d[:, 2:3] + eps)
    uv = uv.reshape(N, 2, H, W).transpose(0, 2, 3, 1)                      # [N,H,W,2]
    if normalized:
        u = uv[..., 0] / (W - 1)
        v = uv[..., 1] / (H - 1)
        uv = (jnp.stack([u, v], axis=-1) - 0.5) * 2
    return uv


if __name__ == "__main__":
    N, H, W = 2, 16, 16

    key = jax.random.PRNGKey(0)
    k1, k2, k3 = jax.random.split(key, 3)

    # Depth map in [1, 3): well-conditioned positive depths.
    depth = jax.random.uniform(k1, (N, 1, H, W), jnp.float32, minval=1.0, maxval=3.0)

    # Camera intrinsics (pinhole) and its exact analytic inverse.
    fx = fy = 0.58 * W
    cx, cy = 0.5 * (W - 1), 0.5 * (H - 1)
    K1 = jnp.array([[fx, 0.0, cx, 0.0],
                    [0.0, fy, cy, 0.0],
                    [0.0, 0.0, 1.0, 0.0],
                    [0.0, 0.0, 0.0, 1.0]], jnp.float32)
    invK1 = jnp.array([[1.0 / fx, 0.0, -cx / fx, 0.0],
                       [0.0, 1.0 / fy, -cy / fy, 0.0],
                       [0.0, 0.0, 1.0, 0.0],
                       [0.0, 0.0, 0.0, 1.0]], jnp.float32)
    K = jnp.broadcast_to(K1[None], (N, 4, 4))
    inv_K = jnp.broadcast_to(invK1[None], (N, 4, 4))

    # Small rigid-ish camera motion.
    rot = jnp.eye(3, dtype=jnp.float32)[None] + 0.02 * jax.random.normal(
        k2, (N, 3, 3), jnp.float32)
    trans = 0.05 * jax.random.normal(k3, (N, 3, 1), jnp.float32)
    top = jnp.concatenate([rot, trans], axis=2)                            # [N,3,4]
    bottom = jnp.broadcast_to(
        jnp.array([[0.0, 0.0, 0.0, 1.0]], jnp.float32)[None], (N, 1, 4))
    T = jnp.concatenate([top, bottom], axis=1)                             # [N,4,4]

    # Run the fused Pallas kernel (normalized and raw pixel coordinates).
    out_n = jax.block_until_ready(rigid_flow(depth, T, K, inv_K, normalized=True))
    out_p = jax.block_until_ready(rigid_flow(depth, T, K, inv_K, normalized=False))

    ref_n = _reference_reprojection(depth, T, K, inv_K, normalized=True)
    ref_p = _reference_reprojection(depth, T, K, inv_K, normalized=False)

    assert out_n.shape == (N, H, W, 2)
    assert out_p.shape == (N, H, W, 2)
    assert jnp.allclose(out_n, ref_n, atol=1e-4, rtol=1e-4), float(
        jnp.max(jnp.abs(out_n - ref_n)))
    assert jnp.allclose(out_p, ref_p, atol=1e-4, rtol=1e-4), float(
        jnp.max(jnp.abs(out_p - ref_p)))

    print("KERNEL_OK")
</pallas_src>

<mosaic_0001>
module attributes {stable_mosaic.version = 11 : i64} {
  func.func @kernel(%arg0: i32, %arg1: i32, %arg2: memref<2x12xf32, #tpu.memory_space<smem>>, %arg3: memref<1x1x256xf32, #tpu.memory_space<vmem>>, %arg4: memref<1x2x1x256xf32, #tpu.memory_space<vmem>>) attributes {dimension_semantics = [#tpu.dimension_semantics<parallel>, #tpu.dimension_semantics<parallel>], iteration_bounds = array<i64: 2, 1>, scalar_prefetch = 1 : i64, scratch_operands = 0 : i64, tpu.core_type = #tpu.core_type<tc>, window_params = [{transform_indices = @transform_0, window_bounds = array<i64: 1, 1, 256>}, {transform_indices = @transform_1, window_bounds = array<i64: 1, 2, 1, 256>}]} {
    %c0 = arith.constant 0 : index
    %c0_0 = arith.constant 0 : index
    %c0_1 = arith.constant 0 : index
    %0 = vector.load %arg3[%c0, %c0_0, %c0_1] : memref<1x1x256xf32, #tpu.memory_space<vmem>>, vector<1x1x256xf32>
    %1 = vector.shape_cast %0 : vector<1x1x256xf32> to vector<1x256xf32>
    %2 = tpu.iota {dimensions = array<i32: 0>} : vector<1x256xi32>
    %3 = arith.sitofp %2 : vector<1x256xi32> to vector<1x256xf32>
    %4 = tpu.iota {dimensions = array<i32: 1>} : vector<1x256xi32>
    %5 = arith.sitofp %4 : vector<1x256xi32> to vector<1x256xf32>
    %c256_i32 = arith.constant 256 : i32
    %6 = arith.muli %arg1, %c256_i32 : i32
    %7 = arith.sitofp %6 : i32 to f32
    %cst = arith.constant 2.560000e+02 : f32
    %8 = vector.broadcast %cst : f32 to vector<1x256xf32>
    %9 = arith.mulf %3, %8 : vector<1x256xf32>
    %10 = vector.broadcast %7 : f32 to vector<1x256xf32>
    %11 = arith.addf %10, %9 : vector<1x256xf32>
    %12 = arith.addf %11, %5 : vector<1x256xf32>
    %cst_2 = arith.constant 5.000000e-01 : f32
    %13 = vector.broadcast %cst_2 : f32 to vector<1x256xf32>
    %14 = arith.addf %12, %13 : vector<1x256xf32>
    %cst_3 = arith.constant 6.250000e-02 : f32
    %15 = vector.broadcast %cst_3 : f32 to vector<1x256xf32>
    %16 = arith.mulf %14, %15 : vector<1x256xf32>
    %17 = math.floor %16 : vector<1x256xf32>
    %cst_4 = arith.constant 1.600000e+01 : f32
    %18 = vector.broadcast %cst_4 : f32 to vector<1x256xf32>
    %19 = arith.mulf %17, %18 : vector<1x256xf32>
    %20 = arith.subf %12, %19 : vector<1x256xf32>
    %cst_5 = arith.constant 1.600000e+01 : f32
    %21 = vector.broadcast %cst_5 : f32 to vector<1x256xf32>
    %22 = arith.cmpf oge, %20, %21 : vector<1x256xf32>
    %23 = arith.extui %22 : vector<1x256xi1> to vector<1x256xi32>
    %24 = arith.sitofp %23 : vector<1x256xi32> to vector<1x256xf32>
    %cst_6 = arith.constant 0.000000e+00 : f32
    %25 = vector.broadcast %cst_6 : f32 to vector<1x256xf32>
    %26 = arith.cmpf olt, %20, %25 : vector<1x256xf32>
    %27 = arith.extui %26 : vector<1x256xi1> to vector<1x256xi32>
    %28 = arith.sitofp %27 : vector<1x256xi32> to vector<1x256xf32>
    %29 = arith.subf %24, %28 : vector<1x256xf32>
    %30 = arith.addf %17, %29 : vector<1x256xf32>
    %cst_7 = arith.constant 1.600000e+01 : f32
    %31 = vector.broadcast %cst_7 : f32 to vector<1x256xf32>
    %32 = arith.mulf %29, %31 : vector<1x256xf32>
    %33 = arith.subf %20, %32 : vector<1x256xf32>
    %34 = arith.index_cast %arg0 : i32 to index
    %c0_8 = arith.constant 0 : index
    %35 = memref.load %arg2[%34, %c0_8] : memref<2x12xf32, #tpu.memory_space<smem>>
    %36 = arith.index_cast %arg0 : i32 to index
    %c1 = arith.constant 1 : index
    %37 = memref.load %arg2[%36, %c1] : memref<2x12xf32, #tpu.memory_space<smem>>
    %38 = arith.index_cast %arg0 : i32 to index
    %c2 = arith.constant 2 : index
    %39 = memref.load %arg2[%38, %c2] : memref<2x12xf32, #tpu.memory_space<smem>>
    %40 = arith.index_cast %arg0 : i32 to index
    %c3 = arith.constant 3 : index
    %41 = memref.load %arg2[%40, %c3] : memref<2x12xf32, #tpu.memory_space<smem>>
    %42 = arith.index_cast %arg0 : i32 to index
    %c4 = arith.constant 4 : index
    %43 = memref.load %arg2[%42, %c4] : memref<2x12xf32, #tpu.memory_space<smem>>
    %44 = arith.index_cast %arg0 : i32 to index
    %c5 = arith.constant 5 : index
    %45 = memref.load %arg2[%44, %c5] : memref<2x12xf32, #tpu.memory_space<smem>>
    %46 = arith.index_cast %arg0 : i32 to index
    %c6 = arith.constant 6 : index
    %47 = memref.load %arg2[%46, %c6] : memref<2x12xf32, #tpu.memory_space<smem>>
    %48 = arith.index_cast %arg0 : i32 to index
    %c7 = arith.constant 7 : index
    %49 = memref.load %arg2[%48, %c7] : memref<2x12xf32, #tpu.memory_space<smem>>
    %50 = arith.index_cast %arg0 : i32 to index
    %c8 = arith.constant 8 : index
    %51 = memref.load %arg2[%50, %c8] : memref<2x12xf32, #tpu.memory_space<smem>>
    %52 = arith.index_cast %arg0 : i32 to index
    %c9 = arith.constant 9 : index
    %53 = memref.load %arg2[%52, %c9] : memref<2x12xf32, #tpu.memory_space<smem>>
    %54 = arith.index_cast %arg0 : i32 to index
    %c10 = arith.constant 10 : index
    %55 = memref.load %arg2[%54, %c10] : memref<2x12xf32, #tpu.memory_space<smem>>
    %56 = arith.index_cast %arg0 : i32 to index
    %c11 = arith.constant 11 : index
    %57 = memref.load %arg2[%56, %c11] : memref<2x12xf32, #tpu.memory_space<smem>>
    %58 = vector.broadcast %35 : f32 to vector<1x256xf32>
    %59 = arith.mulf %58, %33 : vector<1x256xf32>
    %60 = vector.broadcast %37 : f32 to vector<1x256xf32>
    %61 = arith.mulf %60, %30 : vector<1x256xf32>
    %62 = arith.addf %59, %61 : vector<1x256xf32>
    %63 = vector.broadcast %39 : f32 to vector<1x256xf32>
    %64 = arith.addf %62, %63 : vector<1x256xf32>
    %65 = arith.mulf %1, %64 : vector<1x256xf32>
    %66 = vector.broadcast %53 : f32 to vector<1x256xf32>
    %67 = arith.addf %65, %66 : vector<1x256xf32>
    %68 = vector.broadcast %41 : f32 to vector<1x256xf32>
    %69 = arith.mulf %68, %33 : vector<1x256xf32>
    %70 = vector.broadcast %43 : f32 to vector<1x256xf32>
    %71 = arith.mulf %70, %30 : vector<1x256xf32>
    %72 = arith.addf %69, %71 : vector<1x256xf32>
    %73 = vector.broadcast %45 : f32 to vector<1x256xf32>
    %74 = arith.addf %72, %73 : vector<1x256xf32>
    %75 = arith.mulf %1, %74 : vector<1x256xf32>
    %76 = vector.broadcast %55 : f32 to vector<1x256xf32>
    %77 = arith.addf %75, %76 : vector<1x256xf32>
    %78 = vector.broadcast %47 : f32 to vector<1x256xf32>
    %79 = arith.mulf %78, %33 : vector<1x256xf32>
    %80 = vector.broadcast %49 : f32 to vector<1x256xf32>
    %81 = arith.mulf %80, %30 : vector<1x256xf32>
    %82 = arith.addf %79, %81 : vector<1x256xf32>
    %83 = vector.broadcast %51 : f32 to vector<1x256xf32>
    %84 = arith.addf %82, %83 : vector<1x256xf32>
    %85 = arith.mulf %1, %84 : vector<1x256xf32>
    %86 = vector.broadcast %57 : f32 to vector<1x256xf32>
    %87 = arith.addf %85, %86 : vector<1x256xf32>
    %cst_9 = arith.constant 1.000000e-07 : f32
    %88 = vector.broadcast %cst_9 : f32 to vector<1x256xf32>
    %89 = arith.addf %87, %88 : vector<1x256xf32>
    %90 = tpu.reciprocal %89 : vector<1x256xf32> -> vector<1x256xf32>
    %91 = arith.mulf %67, %90 : vector<1x256xf32>
    %92 = arith.mulf %77, %90 : vector<1x256xf32>
    %cst_10 = arith.constant 0.13333334 : f32
    %93 = vector.broadcast %cst_10 : f32 to vector<1x256xf32>
    %94 = arith.mulf %91, %93 : vector<1x256xf32>
    %cst_11 = arith.constant 1.000000e+00 : f32
    %95 = vector.broadcast %cst_11 : f32 to vector<1x256xf32>
    %96 = arith.subf %94, %95 : vector<1x256xf32>
    %cst_12 = arith.constant 0.13333334 : f32
    %97 = vector.broadcast %cst_12 : f32 to vector<1x256xf32>
    %98 = arith.mulf %92, %97 : vector<1x256xf32>
    %cst_13 = arith.constant 1.000000e+00 : f32
    %99 = vector.broadcast %cst_13 : f32 to vector<1x256xf32>
    %100 = arith.subf %98, %99 : vector<1x256xf32>
    %c0_14 = arith.constant 0 : index
    %c0_15 = arith.constant 0 : index
    %c0_16 = arith.constant 0 : index
    %c0_17 = arith.constant 0 : index
    %101 = vector.load %arg4[%c0_14, %c0_15, %c0_16, %c0_17] : memref<1x2x1x256xf32, #tpu.memory_space<vmem>>, vector<1x1x1x256xf32>
    %102 = vector.shape_cast %101 : vector<1x1x1x256xf32> to vector<1x256xf32>
    %103 = vector.shape_cast %96 : vector<1x256xf32> to vector<1x1x1x256xf32>
    tpu.vector_store %arg4[%c0_14, %c0_15, %c0_16, %c0_17], %103 {strides = array<i32>} : memref<1x2x1x256xf32, #tpu.memory_space<vmem>>, vector<1x1x1x256xf32>,
    %c0_18 = arith.constant 0 : index
    %c1_19 = arith.constant 1 : index
    %c0_20 = arith.constant 0 : index
    %c0_21 = arith.constant 0 : index
    %104 = vector.load %arg4[%c0_18, %c1_19, %c0_20, %c0_21] : memref<1x2x1x256xf32, #tpu.memory_space<vmem>>, vector<1x1x1x256xf32>
    %105 = vector.shape_cast %104 : vector<1x1x1x256xf32> to vector<1x256xf32>
    %106 = vector.shape_cast %100 : vector<1x256xf32> to vector<1x1x1x256xf32>
    tpu.vector_store %arg4[%c0_18, %c1_19, %c0_20, %c0_21], %106 {strides = array<i32>} : memref<1x2x1x256xf32, #tpu.memory_space<vmem>>, vector<1x1x1x256xf32>,
    return
  }
  func.func @transform_0(%arg0: i32, %arg1: i32, %arg2: memref<2x12xf32, #tpu.memory_space<smem>>) -> (i32, i32, i32) {
    %c0_i32 = arith.constant 0 : i32
    %c0_i32_0 = arith.constant 0 : i32
    return %arg0, %arg1, %c0_i32 : i32, i32, i32
  }
  func.func @transform_1(%arg0: i32, %arg1: i32, %arg2: memref<2x12xf32, #tpu.memory_space<smem>>) -> (i32, i32, i32, i32) {
    %c0_i32 = arith.constant 0 : i32
    %c0_i32_0 = arith.constant 0 : i32
    %c0_i32_1 = arith.constant 0 : i32
    return %arg0, %c0_i32, %arg1, %c0_i32_0 : i32, i32, i32, i32
  }
}

</mosaic_0001>

<llo_original>
// kernel: rigid_flow.1
$region0: #{rigid_flow.1}
  #allocation0 [shape = 'u32[]', space=smem, size = 0x4, offset = 0x4, fixed_abs, tag = 'smem constant byte address 0x4 - core index']
  #allocation1 [shape = 'u32[144,128]{1,0:T(1,128)}', space=vmem, size = 0x12000, scoped, tag = 'internal scratch']
  #allocation2 [shape = 's32[1]{0}', space=sflag, size = 0x4, scoped, tag = 'scoped memory for rigid_flow.1']
  #allocation3 [shape = 'u8[1024]{0}', space=smem, size = 0x400, scoped, tag = 'prefetched SMEM operand 0']
  %s0 = inlined_call_operand.vmem [shape: f32[2,12], index: 0, kind: input, shape index: {}]
  %s1 = inlined_call_operand.vmem [shape: f32[2,1,256], index: 1, kind: input, shape index: {}]
  %s2 = inlined_call_operand.vmem [shape: f32[2,2,1,256], index: 2, kind: output, shape index: {}]
  %s3 = sld [smem:[#allocation0]]
  $region37: #{rigid_flow.1} parent=0
    _
  %s5 = ssub.s32 1, %s3
  %s6 = scalar_select 0, %s5, %s3
  %s7 = sshll.u32 %s0, 4
  %s8 = int_to_ptr.vmem [resolvable:$true] %s7
  %10 = dma.vmem_to_smem %s8, 32, [#allocation3], [#allocation2]
  %11 = dma.done [#allocation2], 32
  %12 = sfence
  loop: start=0, step=1, limit=4
  $region2: #{rigid_flow.1} parent=0 // loop_pre_header
    _
  $region3: #{rigid_flow.1} parent=0 // loop_header
    %s14 = sphi 0, %s18
    %p15 = scmp.ge.s32.totalorder %s14, 4
    %s21 = sphi 0, %s33
    %s22 = sphi 0, %s29
    %s23 = sphi 0, %s21
    %s24 = sphi 0, %s22
    %s25 = sphi 0, %s23
    %s26 = sphi 0, %s24
    %s38 = sphi 0, %s40
    %s41 = sphi 0, %s38
    %s42 = sphi 0, %s41
    %s58 = sphi 0, %s42
    %s66 = sphi 0, %s68
    %s69 = sphi 0, %s66
    %s70 = sphi 0, %s69
    %s86 = sphi 0, %s70
  $region4: #{rigid_flow.1} parent=0 // loop_header_branch
    %17 = sbr.rel (%p15) target = $region8
  $region5: #{rigid_flow.1} parent=0 // loop_body
    %s19 = ssub.s32 %s14, 1
    %s20 = ssub.s32 %s14, 2
    %s27 = sadd.s32 1, %s22
    %p28 = scmp.ge.s32.totalorder %s27, 1
    %s29 = scalar_select %p28, 0, %s27
    %s30 = sadd.s32 1, %s21
    %s31 = scalar_select %p28, %s30, %s21
    %p32 = scmp.ge.s32.totalorder %s31, 2
    %s33 = scalar_select %p32, 0, %s31
    %s34 = ssub.s32 %s21, %s33
    %s35 = ssub.s32 %s22, %s29
    %s36 = sor.u32 %s34, %s35
    %p37 = scmp.eq.s32.totalorder %s36, 0
    %s39 = sadd.s32 %s38, 1
    %s40 = scalar_select %p37, %s38, %s39
    %p43 = pneg %p37
    %p44 = scmp.eq.s32.totalorder %s14, 1
    %p45 = por %p43, %p44
    %p46 = scmp.ne.s32.totalorder %s38, %s41
    %p47 = scmp.eq.s32.totalorder %s14, 0
    %p48 = por %p46, %p47
    %p49 = scmp.ne.s32.totalorder %s38, %s41
    %p50 = scmp.eq.s32.totalorder %s19, 1
    %p51 = por %p49, %p50
    %p52 = scmp.ne.s32.totalorder %s41, %s42
    %p53 = scmp.eq.s32.totalorder %s19, 0
    %p54 = por %p52, %p53
    %p55 = scmp.ne.s32.totalorder %s41, %s42
    %p56 = scmp.eq.s32.totalorder %s20, 1
    %p57 = por %p55, %p56
    %p59 = scmp.ne.s32.totalorder %s42, %s58
    %p60 = scmp.eq.s32.totalorder %s20, 0
    %p61 = por %p59, %p60
    %s62 = ssub.s32 %s21, %s33
    %s63 = ssub.s32 %s22, %s29
    %s64 = sor.u32 %s62, %s63
    %p65 = scmp.eq.s32.totalorder %s64, 0
    %s67 = sadd.s32 %s66, 1
    %s68 = scalar_select %p65, %s66, %s67
    %p71 = pneg %p65
    %p72 = scmp.eq.s32.totalorder %s14, 1
    %p73 = por %p71, %p72
    %p74 = scmp.ne.s32.totalorder %s66, %s69
    %p75 = scmp.eq.s32.totalorder %s14, 0
    %p76 = por %p74, %p75
    %p77 = scmp.ne.s32.totalorder %s66, %s69
    %p78 = scmp.eq.s32.totalorder %s19, 1
    %p79 = por %p77, %p78
    %p80 = scmp.ne.s32.totalorder %s69, %s70
    %p81 = scmp.eq.s32.totalorder %s19, 0
    %p82 = por %p80, %p81
    %p83 = scmp.ne.s32.totalorder %s69, %s70
    %p84 = scmp.eq.s32.totalorder %s20, 1
    %p85 = por %p83, %p84
    %p87 = scmp.ne.s32.totalorder %s70, %s86
    %p88 = scmp.eq.s32.totalorder %s20, 0
    %p89 = por %p87, %p88
    %p90 = scmp.le.s32.totalorder 1, %s14
    %p91 = scmp.lt.s32.totalorder %s14, 3
    %p92 = pnand %p90, %p91
    %p93 = pneg %p92
    // Predicated region
    $region9: #{rigid_flow.1} parent=5 // pred_check
      _
    $region10: #{rigid_flow.1} parent=5 // pred_check_branch
      %95 = sbr.rel (%p92) target = $region12
    $region11: #{rigid_flow.1} parent=5 // pred_region
      %s96 = ssub.s32 %s14, 1
    $region12: #{rigid_flow.1} parent=5 // pred_fallthru
      _
    %p97 = scmp.lt.s32.totalorder %s14, 2
    // Predicated region
    $region13: #{rigid_flow.1} parent=5 // pred_check
      %p98 = pneg %p97
    $region14: #{rigid_flow.1} parent=5 // pred_check_branch
      %100 = sbr.rel (%p98) target = $region16
    $region15: #{rigid_flow.1} parent=5 // pred_region
      // Predicated region
      $region17: #{rigid_flow.1} parent=15 // pred_check
        %p101 = pneg %p48
      $region18: #{rigid_flow.1} parent=15 // pred_check_branch
        %103 = sbr.rel (%p101) target = $region20
      $region19: #{rigid_flow.1} parent=15 // pred_region
        %p104 = scmp.lt.s32.totalorder %s21, 1
        %s105 = scalar_select %p104, %s21, 1
        %p106 = scmp.lt.s32.totalorder %s22, 0
        %s107 = scalar_select %p106, %s22, 0
        %s108 = smul.addr %s107, 2
        %s109 = smul.addr %s105, 2
        %s110 = sadd.s32 %s108, %s109
        %s111 = scalar_lea.vmem %s1, %s110
      $region20: #{rigid_flow.1} parent=15 // pred_fallthru
        _
    $region16: #{rigid_flow.1} parent=5 // pred_fallthru
      _
    %p112 = scmp.le.s32.totalorder 1, %s14
    %p113 = scmp.lt.s32.totalorder %s14, 3
    %p114 = pnand %p112, %p113
    %p115 = pneg %p114
    // Predicated region
    $region21: #{rigid_flow.1} parent=5 // pred_check
      _
    $region22: #{rigid_flow.1} parent=5 // pred_check_branch
      %117 = sbr.rel (%p114) target = $region24
    $region23: #{rigid_flow.1} parent=5 // pred_region
      %s118 = ssub.s32 %s14, 1
      %p119 = scmp.lt.s32.totalorder %s23, 1
      %s120 = scalar_select %p119, %s23, 1
      %p121 = scmp.lt.s32.totalorder %s24, 0
      %s122 = scalar_select %p121, %s24, 0
      %s123 = smul.addr %s122, 2
      %s124 = smul.addr %s120, 2
      %s125 = sadd.s32 %s123, %s124
      %s126 = scalar_lea.vmem %s1, %s125
      %p127 = pneg %p54
      %p128 = pneg %p51
      %p129 = pneg %p82
      %p130 = pneg %p79
      %p131 = scmp.lt.s32.totalorder %s23, 1
      %s132 = scalar_select %p131, %s23, 1
      %p133 = scmp.lt.s32.totalorder %s24, 0
      %s134 = scalar_select %p133, %s24, 0
      %s135 = smul.addr %s134, 2
      %s136 = smul.addr %s132, 4
      %s137 = sadd.s32 %s135, %s136
      %s138 = scalar_lea.vmem %s2, %s137
      %p139 = scmp.lt.s32.totalorder %s23, 1
      %s140 = scalar_select %p139, %s23, 1
      %p141 = scmp.lt.s32.totalorder %s24, 0
      %s142 = scalar_select %p141, %s24, 0
      %s143 = smul.addr %s142, 2
      %s144 = smul.addr %s140, 2
      %s145 = sadd.s32 %s143, %s144
      %s146 = scalar_lea.vmem %s1, %s145
      %p147 = scmp.lt.s32.totalorder %s23, 1
      %s148 = scalar_select %p147, %s23, 1
      %p149 = scmp.lt.s32.totalorder %s24, 0
      %s150 = scalar_select %p149, %s24, 0
      %s151 = smul.addr %s150, 2
      %s152 = smul.addr %s148, 4
      %s153 = sadd.s32 %s151, %s152
      %s154 = scalar_lea.vmem %s2, %s153
      %v155 = vld [vmem:[%s146] sm:$0x3]
      %v156 = vlaneseq
      %v157 = vshrl.u32 %v156, 7
      %v158 = vcvt.s32.f32 %v157
      %v159 = vlaneseq
      %v160 = vand.u32 %v159, 127
      %v161 = vadd.s32 %v160, 128
      %v162 = vcvt.s32.f32 %v160
      %v163 = vcvt.s32.f32 %v161
      %s164 = smul.u32 %s24, 256
      %s165 = scvt.s32.f32 %s164
      %v166 = vmul.f32 %v158, 256.0
      %v167 = vstv %s165
      %v168 = vadd.f32 %v167, %v166
      %v169 = vadd.f32 %v168, %v162
      %v170 = vadd.f32 %v168, %v163
      %v171 = vadd.f32 %v169, 0.5
      %v172 = vadd.f32 %v170, 0.5
      %v173 = vmul.f32 %v171, 0.0625
      %v174 = vmul.f32 %v172, 0.0625
      %v175 = vfloor.f32 %v173
      %v176 = vfloor.f32 %v174
      %v177 = vmul.f32 %v175, 16.0
      %v178 = vmul.f32 %v176, 16.0
      %v179 = vsub.f32 %v169, %v177
      %v180 = vsub.f32 %v170, %v178
      %vm181 = vcmp.ge.f32.partialorder %v179, 16.0
      %vm182 = vcmp.ge.f32.partialorder %v180, 16.0
      %v183 = vsel %vm181, 1, 0
      %v184 = vsel %vm182, 1, 0
      %v185 = vcvt.s32.f32 %v183
      %v186 = vcvt.s32.f32 %v184
      %vm187 = vcmp.lt.f32.partialorder %v179, 0.0
      %vm188 = vcmp.lt.f32.partialorder %v180, 0.0
      %v189 = vsel %vm187, 1, 0
      %v190 = vsel %vm188, 1, 0
      %v191 = vcvt.s32.f32 %v189
      %v192 = vcvt.s32.f32 %v190
      %v193 = vsub.f32 %v185, %v191
      %v194 = vsub.f32 %v186, %v192
      %v195 = vadd.f32 %v175, %v193
      %v196 = vadd.f32 %v176, %v194
      %v197 = vmul.f32 %v193, 16.0
      %v198 = vmul.f32 %v194, 16.0
      %v199 = vsub.f32 %v179, %v197
      %v200 = vsub.f32 %v180, %v198
      %s201 = smul.u32 %s23, 128
      %s202 = sld [smem:[#allocation3 + %s201]]
      %s203 = sadd.s32 %s201, 1
      %s204 = sld [smem:[#allocation3 + %s203]]
      %s205 = sadd.s32 %s201, 2
      %s206 = sld [smem:[#allocation3 + %s205]]
      %s207 = sadd.s32 %s201, 3
      %s208 = sld [smem:[#allocation3 + %s207]]
      %s209 = sadd.s32 %s201, 4
      %s210 = sld [smem:[#allocation3 + %s209]]
      %s211 = sadd.s32 %s201, 5
      %s212 = sld [smem:[#allocation3 + %s211]]
      %s213 = sadd.s32 %s201, 6
      %s214 = sld [smem:[#allocation3 + %s213]]
      %s215 = sadd.s32 %s201, 7
      %s216 = sld [smem:[#allocation3 + %s215]]
      %s217 = sadd.s32 %s201, 8
      %s218 = sld [smem:[#allocation3 + %s217]]
      %s219 = sadd.s32 %s201, 9
      %s220 = sld [smem:[#allocation3 + %s219]]
      %s221 = sadd.s32 %s201, 10
      %s222 = sld [smem:[#allocation3 + %s221]]
      %s223 = sadd.s32 %s201, 11
      %s224 = sld [smem:[#allocation3 + %s223]]
      %v225 = vstv %s202
      %v226 = vmul.f32 %v225, %v199
      %v227 = vmul.f32 %v225, %v200
      %v228 = vstv %s204
      %v229 = vmul.f32 %v228, %v195
      %v230 = vmul.f32 %v228, %v196
      %v231 = vadd.f32 %v226, %v229
      %v232 = vadd.f32 %v227, %v230
      %v233 = vstv %s206
      %v234 = vadd.f32 %v231, %v233
      %v235 = vadd.f32 %v232, %v233
      %v238 = vcombine.low %v234, %v235
      %v240 = vunpack.c.l.s4 1966171168
      %v241 = vunpack.c.0.s8 %v240
      %v242 = vlaneseq
      %v243 = vshrl.u32 %v242, 7
      %v244 = vsub.s32 %v241, %v243
      %v245 = vrot.slane %v238, %v244
      %v247 = vunpack.c.l.s4 1966171168
      %v248 = vunpack.c.0.s8 %v247
      %v249 = vlaneseq
      %v250 = vshrl.u32 %v249, 7
      %v251 = vsub.s32 %v248, %v250
      %v252 = vrot.slane %v245, %v251
      %v254 = vmul.f32 %v155, %v252
      %v255 = vstv %s220
      %v256 = vadd.f32 %v254, %v255
      %v257 = vstv %s208
      %v258 = vmul.f32 %v257, %v199
      %v259 = vmul.f32 %v257, %v200
      %v260 = vstv %s210
      %v261 = vmul.f32 %v260, %v195
      %v262 = vmul.f32 %v260, %v196
      %v263 = vadd.f32 %v258, %v261
      %v264 = vadd.f32 %v259, %v262
      %v265 = vstv %s212
      %v266 = vadd.f32 %v263, %v265
      %v267 = vadd.f32 %v264, %v265
      %v270 = vcombine.low %v266, %v267
      %v272 = vunpack.c.l.s4 1966171168
      %v273 = vunpack.c.0.s8 %v272
      %v274 = vlaneseq
      %v275 = vshrl.u32 %v274, 7
      %v276 = vsub.s32 %v273, %v275
      %v277 = vrot.slane %v270, %v276
      %v279 = vunpack.c.l.s4 1966171168
      %v280 = vunpack.c.0.s8 %v279
      %v281 = vlaneseq
      %v282 = vshrl.u32 %v281, 7
      %v283 = vsub.s32 %v280, %v282
      %v284 = vrot.slane %v277, %v283
      %v286 = vmul.f32 %v155, %v284
      %v287 = vstv %s222
      %v288 = vadd.f32 %v286, %v287
      %v289 = vstv %s214
      %v290 = vmul.f32 %v289, %v199
      %v291 = vmul.f32 %v289, %v200
      %v292 = vstv %s216
      %v293 = vmul.f32 %v292, %v195
      %v294 = vmul.f32 %v292, %v196
      %v295 = vadd.f32 %v290, %v293
      %v296 = vadd.f32 %v291, %v294
      %v297 = vstv %s218
      %v298 = vadd.f32 %v295, %v297
      %v299 = vadd.f32 %v296, %v297
      %v302 = vcombine.low %v298, %v299
      %v304 = vunpack.c.l.s4 1966171168
      %v305 = vunpack.c.0.s8 %v304
      %v306 = vlaneseq
      %v307 = vshrl.u32 %v306, 7
      %v308 = vsub.s32 %v305, %v307
      %v309 = vrot.slane %v302, %v308
      %v311 = vunpack.c.l.s4 1966171168
      %v312 = vunpack.c.0.s8 %v311
      %v313 = vlaneseq
      %v314 = vshrl.u32 %v313, 7
      %v315 = vsub.s32 %v312, %v314
      %v316 = vrot.slane %v309, %v315
      %v318 = vmul.f32 %v155, %v316
      %v319 = vstv %s224
      %v320 = vadd.f32 %v318, %v319
      %v321 = vadd.f32 %v320, 1e-07
      %v322 = vrcp.pop %v321
      %v323 = vmul.f32 %v256, %v322
      %v324 = vmul.f32 %v288, %v322
      %v325 = vmul.f32 %v323, 0.13333334
      %v326 = vsub.f32 %v325, 1.0
      %v327 = vmul.f32 %v324, 0.13333334
      %v328 = vsub.f32 %v327, 1.0
      %v329 = vlaneseq
      %vm330 = vcmp.ge.s32.totalorder %v329, 0
      %vm331 = vcmp.lt.s32.totalorder %v329, 256
      %vm332 = vmand %vm330, %vm331
      %333 = vst.msk [vmem:[%s154] sm:$0x3] %vm332, %v326
      %s334 = scalar_lea.vmem %s154, 2
      %335 = vst.msk [vmem:[%s334] sm:$0x3] %vm332, %v328
      %p336 = scmp.lt.s32.totalorder %s23, 1
      %s337 = scalar_select %p336, %s23, 1
      %p338 = scmp.lt.s32.totalorder %s24, 0
      %s339 = scalar_select %p338, %s24, 0
      %s340 = smul.addr %s339, 2
      %s341 = smul.addr %s337, 4
      %s342 = sadd.s32 %s340, %s341
      %s343 = scalar_lea.vmem %s2, %s342
      // Predicated region
      $region25: #{rigid_flow.1} parent=23 // pred_check
        %p344 = pneg %p79
      $region26: #{rigid_flow.1} parent=23 // pred_check_branch
        %346 = sbr.rel (%p344) target = $region28
      $region27: #{rigid_flow.1} parent=23 // pred_region
        _
      $region28: #{rigid_flow.1} parent=23 // pred_fallthru
        _
    $region24: #{rigid_flow.1} parent=5 // pred_fallthru
      _
    %p347 = scmp.le.s32.totalorder 2, %s14
    // Predicated region
    $region29: #{rigid_flow.1} parent=5 // pred_check
      %p348 = pneg %p347
    $region30: #{rigid_flow.1} parent=5 // pred_check_branch
      %350 = sbr.rel (%p348) target = $region32
    $region31: #{rigid_flow.1} parent=5 // pred_region
      %s351 = ssub.s32 %s14, 2
      // Predicated region
      $region33: #{rigid_flow.1} parent=31 // pred_check
        %p352 = pneg %p85
      $region34: #{rigid_flow.1} parent=31 // pred_check_branch
        %354 = sbr.rel (%p352) target = $region36
      $region35: #{rigid_flow.1} parent=31 // pred_region
        %p355 = scmp.lt.s32.totalorder %s25, 1
        %s356 = scalar_select %p355, %s25, 1
        %p357 = scmp.lt.s32.totalorder %s26, 0
        %s358 = scalar_select %p357, %s26, 0
        %s359 = smul.addr %s358, 2
        %s360 = smul.addr %s356, 4
        %s361 = sadd.s32 %s359, %s360
        %s362 = scalar_lea.vmem %s2, %s361
      $region36: #{rigid_flow.1} parent=31 // pred_fallthru
        _
    $region32: #{rigid_flow.1} parent=5 // pred_fallthru
      _
  $region6: #{rigid_flow.1} parent=0 // loop_footer
    %s18 = sadd.s32 1, %s14
  $region7: #{rigid_flow.1} parent=0 // loop_footer_branch
    %13 = sbr.rel target = $region3
  $region8: #{rigid_flow.1} parent=0 // loop_exit
    _

</llo_original>
